<compile_context>
chip_gen: v7x
topology: tpu7x:2x2x1
jax: 0.10.0
libtpu: 0.0.40
codegen_flags: <defaults>
</compile_context>

<pallas_src>
import math

import jax
import jax.numpy as jnp
import numpy as np
from jax.experimental import pallas as pl
from jax.experimental.pallas import tpu as pltpu

NINF = -1e5  # same constant partial_tagger uses


def _cdiv(a, b):
    return -(-a // b)


# ---------------------------------------------------------------------------
# Kernel: one (Lb, lane) tile per grid step.
#   bad(l, c) = flag(l) & const(c)   (bit-packed; != 0 => disallowed)
#   out       = where(bad != 0, NINF, lp)
# ---------------------------------------------------------------------------
def _constrain_kernel(flag_ref,   # VMEM (1, Lb, 1)   int32 packed per-row flag bits
                      const_ref,  # VMEM (1, lane)    int32 packed static disallow bits
                      lp_ref,     # VMEM (1, Lb, lane) in input dtype
                      out_ref):   # VMEM (1, Lb, lane) in input dtype
    lp = lp_ref[0]                                      # (Lb, lane)
    bad = (flag_ref[0] & const_ref[...]) != 0           # (Lb,1) & (1,lane) -> (Lb,lane)
    out_ref[0] = jnp.where(bad, jnp.asarray(NINF, lp.dtype), lp)


# ---------------------------------------------------------------------------
# Wrapper helpers
# ---------------------------------------------------------------------------
def _fold_group(TT, L):
    """How many consecutive L positions to fold into the lane axis (power of two)."""
    g = 128 // math.gcd(TT, 128)
    if g == 1:          # already a multiple of 128 lanes
        return 1
    if g > 8:           # 3*g flag bits must fit in int32; also too much replication
        return 1
    if L % g != 0:      # avoid padding (would add an extra HBM copy in the wrapper)
        return 1
    return g


def _pack_position_flags(mask_b, L):
    """[B, L] int32; bit0=apply transitions, bit1=apply start, bit2=apply end."""
    B = mask_b.shape[0]
    t_idx = jnp.arange(L)
    next_mask = jnp.concatenate([mask_b[:, 1:], jnp.zeros((B, 1), dtype=bool)], axis=1)
    f_trans = (mask_b & (t_idx > 0)[None, :]).astype(jnp.int32)
    # NOTE: start constraint applied at t==0 unconditionally (partial_tagger assumes mask[:,0]=True).
    f_start = jnp.broadcast_to((t_idx == 0)[None, :], (B, L)).astype(jnp.int32)
    f_end = (mask_b & ~next_mask).astype(jnp.int32)
    return f_trans + 2 * f_start + 4 * f_end


def _pack_constraint_bits(start_states, end_states, transitions):
    """(T*T,) int32 with the same (prev*T + cur) layout as the flattened log potentials."""
    T = transitions.shape[0]
    tb = transitions.astype(bool).reshape(-1)
    sb = jnp.broadcast_to(start_states.astype(bool)[None, :], (T, T)).reshape(-1)
    eb = jnp.broadcast_to(end_states.astype(bool)[None, :], (T, T)).reshape(-1)
    return ((~tb).astype(jnp.int32)
            + 2 * (~sb).astype(jnp.int32)
            + 4 * (~eb).astype(jnp.int32))


def _choose_l_block(Lr, lane, itemsize, B, target_bytes=2 << 20):
    """Pick the row-block size (rows are already lane-folded)."""
    align = 16 if itemsize < 4 else 8
    row_bytes = max(lane * itemsize, 1)
    if Lr * row_bytes <= 2 * target_bytes:
        lb = Lr
    else:
        lb = max(align, (target_bytes // row_bytes) // align * align)
        lb = min(lb, Lr)
    # v7x has 2 TensorCores; make sure the "parallel" grid has at least 2 steps to shard.
    if B * _cdiv(Lr, lb) < 2 and Lr >= 2 * align:
        lb = min(Lr, max(align, _cdiv(_cdiv(Lr, 2), align) * align))
    return int(lb)


# ---------------------------------------------------------------------------
# Wrapper
# ---------------------------------------------------------------------------
def constrain_log_potentials(log_potentials, mask, start_states, end_states, transitions,
                             *, l_block=None, donate=False):
    B, L, T, T2 = log_potentials.shape
    assert T == T2
    TT = T * T
    dtype = log_potentials.dtype
    itemsize = jnp.dtype(dtype).itemsize

    # ---- lane folding: fold G consecutive positions so the lane dim is a multiple of 128 ----
    G = _fold_group(TT, L)
    Lr = L // G
    lane = G * TT
    lp2 = log_potentials.reshape(B, Lr, lane)          # contiguous reshape: lane-dense last dim

    # ---- packed per-position flags (3 bits/position; G positions per folded row) ----
    flag3 = _pack_position_flags(mask.astype(bool), L)                 # (B, L) int32
    if G > 1:
        fg = flag3.reshape(B, Lr, G)
        shifts = (3 * jnp.arange(G, dtype=jnp.int32))[None, None, :]
        frow = jnp.sum(fg << shifts, axis=-1).astype(jnp.int32)        # (B, Lr)
    else:
        frow = flag3
    frow = frow[..., None]                                             # (B, Lr, 1)

    # ---- packed static disallow vector, replicated with matching bit shifts per fold group ----
    bits3 = _pack_constraint_bits(start_states, end_states, transitions)   # (TT,) int32
    if G > 1:
        cvec = jnp.concatenate([bits3 << (3 * g) for g in range(G)]).reshape(1, lane)
    else:
        cvec = bits3.reshape(1, lane)

    # ---- block size / grid ----
    if l_block is None:
        l_block = _choose_l_block(Lr, lane, itemsize, B)
    else:
        l_block = min(int(l_block), Lr)
        if l_block < Lr:
            l_block = max(8, (l_block // 8) * 8)       # keep the (8,128) block constraint
    grid = (B, _cdiv(Lr, l_block))

    flag_spec = pl.BlockSpec((1, l_block, 1), lambda b, l: (b, l, 0))
    const_spec = pl.BlockSpec((1, lane), lambda b, l: (0, 0))
    lp_spec = pl.BlockSpec((1, l_block, lane), lambda b, l: (b, l, 0))
    in_specs = [flag_spec, const_spec, lp_spec]

    # VMEM budget: double-buffered in+out lp blocks plus small flag/const blocks, with headroom.
    lp_block_bytes = l_block * lane * itemsize
    pipelined = 4 * lp_block_bytes + 4 * (l_block * 4 + lane * 4)
    vmem_limit = int(min(max(32 << 20, 2 * pipelined), 56 << 20))

    extra = {}
    if donate:
        # lp2 is the last input; derive its index programmatically (caller must donate the buffer).
        extra["input_output_aliases"] = {len(in_specs) - 1: 0}

    out = pl.pallas_call(
        _constrain_kernel,
        out_shape=jax.ShapeDtypeStruct((B, Lr, lane), dtype),
        grid_spec=pltpu.PrefetchScalarGridSpec(
            num_scalar_prefetch=0,
            grid=grid,
            in_specs=in_specs,
            out_specs=lp_spec,
        ),
        compiler_params=pltpu.CompilerParams(
            dimension_semantics=("parallel", "parallel"),
            vmem_limit_bytes=vmem_limit),
        **extra,
    )(frow, cvec, lp2)

    return out.reshape(B, L, T, T)


class Constrainer:
    """JAX/Pallas port of partial_tagger.decoders.viterbi.Constrainer."""

    def __init__(self, start_states, end_states, transitions):
        self.start_states = jnp.asarray(start_states, dtype=bool)
        self.end_states = jnp.asarray(end_states, dtype=bool)
        self.transitions = jnp.asarray(transitions, dtype=bool)

    def __call__(self, log_potentials, mask):
        return constrain_log_potentials(
            log_potentials, mask, self.start_states, self.end_states, self.transitions)


# ---------------------------------------------------------------------------
# Pure-JAX reference (for correctness check; preserves input dtype)
# ---------------------------------------------------------------------------
def constrain_ref(lp, mask, start_states, end_states, transitions):
    B, L, T, _ = lp.shape
    ninf = jnp.asarray(NINF, lp.dtype)
    mask_b = mask.astype(bool)
    t_idx = jnp.arange(L)[None, :, None, None]

    trans_ok = transitions.astype(bool)[None, None]
    start_ok = start_states.astype(bool)[None, None, None, :]
    end_ok = end_states.astype(bool)[None, None, None, :]

    out = jnp.where((t_idx > 0) & mask_b[:, :, None, None] & ~trans_ok, ninf, lp)
    out = jnp.where((t_idx == 0) & ~start_ok, ninf, out)
    next_mask = jnp.concatenate([mask_b[:, 1:], jnp.zeros((B, 1), bool)], axis=1)
    end_pos = (mask_b & ~next_mask)[:, :, None, None]
    out = jnp.where(end_pos & ~end_ok, ninf, out)
    return out


# ---------------------------------------------------------------------------
# Main
# ---------------------------------------------------------------------------
if __name__ == "__main__":
    B, L, T = 2, 8, 8  # tags: O, B-A, I-A, B-B, I-B, B-C, I-C, X

    labels = ["O", "B-A", "I-A", "B-B", "I-B", "B-C", "I-C", "X"]
    start_states = [not lab.startswith("I-") for lab in labels]          # no I-* at start
    end_states = [True] * T                                              # any tag may end
    transitions = [[True] * T for _ in range(T)]
    for j, lab_j in enumerate(labels):
        if lab_j.startswith("I-"):
            ent = lab_j[2:]
            for i, lab_i in enumerate(labels):
                transitions[i][j] = lab_i in ("B-" + ent, "I-" + ent)    # I-x after B-x/I-x only

    constrainer = Constrainer(start_states, end_states, transitions)

    key = jax.random.PRNGKey(0)
    log_potentials = jax.random.normal(key, (B, L, T, T), dtype=jnp.float32)
    lengths = jnp.array([L, 5], dtype=jnp.int32)
    mask = (jnp.arange(L)[None, :] < lengths[:, None])                   # [B, L] bool

    # --- float32 check (lane-folded path: T*T=64 -> G=2, lane=128) ---
    out = jax.block_until_ready(constrainer(log_potentials, mask))
    ref = constrain_ref(log_potentials, mask,
                        constrainer.start_states, constrainer.end_states,
                        constrainer.transitions)
    assert out.dtype == log_potentials.dtype
    np.testing.assert_allclose(np.asarray(out), np.asarray(ref), rtol=0, atol=0)

    # --- bf16 dtype-preservation check ---
    lp_bf16 = log_potentials.astype(jnp.bfloat16)
    out16 = jax.block_until_ready(constrainer(lp_bf16, mask))
    ref16 = constrain_ref(lp_bf16, mask,
                          constrainer.start_states, constrainer.end_states,
                          constrainer.transitions)
    assert out16.dtype == jnp.bfloat16
    np.testing.assert_allclose(np.asarray(out16.astype(jnp.float32)),
                               np.asarray(ref16.astype(jnp.float32)), rtol=0, atol=0)

    # --- multi-block-over-L check (explicit l_block tiling path, folded rows) ---
    L2 = 32
    lp_big = jax.random.normal(jax.random.PRNGKey(1), (B, L2, T, T), dtype=jnp.float32)
    mask2 = (jnp.arange(L2)[None, :] < jnp.array([L2, 21], jnp.int32)[:, None])
    out2 = jax.block_until_ready(
        constrain_log_potentials(lp_big, mask2,
                                 constrainer.start_states, constrainer.end_states,
                                 constrainer.transitions, l_block=8))
    ref2 = constrain_ref(lp_big, mask2,
                         constrainer.start_states, constrainer.end_states,
                         constrainer.transitions)
    np.testing.assert_allclose(np.asarray(out2), np.asarray(ref2), rtol=0, atol=0)

    # --- non-foldable tag count (T=5 -> TT=25, fallback path with unfolded lanes) ---
    T3 = 5
    start3 = jnp.array([True, True, False, True, False])
    end3 = jnp.array([True, False, True, True, True])
    trans3 = (jax.random.uniform(jax.random.PRNGKey(2), (T3, T3)) > 0.3)
    lp3 = jax.random.normal(jax.random.PRNGKey(3), (B, L, T3, T3), dtype=jnp.float32)
    out3 = jax.block_until_ready(
        constrain_log_potentials(lp3, mask, start3, end3, trans3))
    ref3 = constrain_ref(lp3, mask, start3, end3, trans3)
    np.testing.assert_allclose(np.asarray(out3), np.asarray(ref3), rtol=0, atol=0)

    print("KERNEL_OK")
</pallas_src>

<mosaic_0001>
module attributes {stable_mosaic.version = 11 : i64} {
  func.func @_constrain_kernel(%arg0: i32, %arg1: i32, %arg2: memref<1x4x1xi32, #tpu.memory_space<vmem>>, %arg3: memref<1x128xi32, #tpu.memory_space<vmem>>, %arg4: memref<1x4x128xf32, #tpu.memory_space<vmem>>, %arg5: memref<1x4x128xf32, #tpu.memory_space<vmem>>) attributes {dimension_semantics = [#tpu.dimension_semantics<parallel>, #tpu.dimension_semantics<parallel>], iteration_bounds = array<i64: 2, 1>, scalar_prefetch = 0 : i64, scratch_operands = 0 : i64, tpu.core_type = #tpu.core_type<tc>, window_params = [{transform_indices = @transform_0, window_bounds = array<i64: 1, 4, 1>}, {pipeline_mode = #tpu.pipeline_mode<synchronous>, transform_indices = @transform_1, window_bounds = array<i64: 1, 128>}, {transform_indices = @transform_2, window_bounds = array<i64: 1, 4, 128>}, {transform_indices = @transform_3, window_bounds = array<i64: 1, 4, 128>}]} {
    %c0 = arith.constant 0 : index
    %c0_0 = arith.constant 0 : index
    %c0_1 = arith.constant 0 : index
    %0 = vector.load %arg4[%c0, %c0_0, %c0_1] : memref<1x4x128xf32, #tpu.memory_space<vmem>>, vector<1x4x128xf32>
    %1 = vector.shape_cast %0 : vector<1x4x128xf32> to vector<4x128xf32>
    %c0_2 = arith.constant 0 : index
    %c0_3 = arith.constant 0 : index
    %c0_4 = arith.constant 0 : index
    %2 = vector.load %arg2[%c0_2, %c0_3, %c0_4] : memref<1x4x1xi32, #tpu.memory_space<vmem>>, vector<1x4x1xi32>
    %3 = vector.shape_cast %2 : vector<1x4x1xi32> to vector<4x1xi32>
    %c0_5 = arith.constant 0 : index
    %c0_6 = arith.constant 0 : index
    %4 = vector.load %arg3[%c0_5, %c0_6] : memref<1x128xi32, #tpu.memory_space<vmem>>, vector<1x128xi32>
    %5 = vector.broadcast %3 : vector<4x1xi32> to vector<4x128xi32>
    %6 = vector.broadcast %4 : vector<1x128xi32> to vector<4x128xi32>
    %7 = arith.andi %5, %6 : vector<4x128xi32>
    %c0_i32 = arith.constant 0 : i32
    %8 = vector.broadcast %c0_i32 : i32 to vector<4x128xi32>
    %9 = arith.cmpi ne, %7, %8 : vector<4x128xi32>
    %cst = arith.constant -1.000000e+05 : f32
    %10 = vector.broadcast %cst : f32 to vector<4x128xf32>
    %11 = arith.select %9, %10, %1 : vector<4x128xi1>, vector<4x128xf32>
    %c0_7 = arith.constant 0 : index
    %c0_8 = arith.constant 0 : index
    %c0_9 = arith.constant 0 : index
    %12 = vector.load %arg5[%c0_7, %c0_8, %c0_9] : memref<1x4x128xf32, #tpu.memory_space<vmem>>, vector<1x4x128xf32>
    %13 = vector.shape_cast %12 : vector<1x4x128xf32> to vector<4x128xf32>
    %14 = vector.shape_cast %11 : vector<4x128xf32> to vector<1x4x128xf32>
    tpu.vector_store %arg5[%c0_7, %c0_8, %c0_9], %14 {strides = array<i32>} : memref<1x4x128xf32, #tpu.memory_space<vmem>>, vector<1x4x128xf32>,
    return
  }
  func.func @transform_0(%arg0: i32, %arg1: i32) -> (i32, i32, i32) {
    %c0_i32 = arith.constant 0 : i32
    %c0_i32_0 = arith.constant 0 : i32
    return %arg0, %arg1, %c0_i32 : i32, i32, i32
  }
  func.func @transform_1(%arg0: i32, %arg1: i32) -> (i32, i32) {
    %c0_i32 = arith.constant 0 : i32
    %c0_i32_0 = arith.constant 0 : i32
    %c0_i32_1 = arith.constant 0 : i32
    return %c0_i32, %c0_i32_0 : i32, i32
  }
  func.func @transform_2(%arg0: i32, %arg1: i32) -> (i32, i32, i32) {
    %c0_i32 = arith.constant 0 : i32
    %c0_i32_0 = arith.constant 0 : i32
    return %arg0, %arg1, %c0_i32 : i32, i32, i32
  }
  func.func @transform_3(%arg0: i32, %arg1: i32) -> (i32, i32, i32) {
    %c0_i32 = arith.constant 0 : i32
    %c0_i32_0 = arith.constant 0 : i32
    return %arg0, %arg1, %c0_i32 : i32, i32, i32
  }
}

</mosaic_0001>

<llo_original>
// kernel: tpu_custom_call.1
$region0: #{tpu_custom_call.1}
  #allocation0 [shape = 'u32[]', space=smem, size = 0x4, offset = 0x4, fixed_abs, tag = 'smem constant byte address 0x4 - core index']
  #allocation1 [shape = 'u32[144,128]{1,0:T(1,128)}', space=vmem, size = 0x12000, scoped, tag = 'internal scratch']
  %s0 = inlined_call_operand.vmem [shape: s32[2,4,1], index: 0, kind: input, shape index: {}]
  %s1 = inlined_call_operand.vmem [shape: s32[1,128], index: 1, kind: input, shape index: {}]
  %s2 = inlined_call_operand.vmem [shape: f32[2,4,128], index: 2, kind: input, shape index: {}]
  %s3 = inlined_call_operand.hbm [shape: f32[2,4,128], index: 3, kind: output, shape index: {}]
  %s4 = sld [smem:[#allocation0]]
  $region45: #{tpu_custom_call.1} parent=0
    _
  %s6 = ssub.s32 1, %s4
  %s7 = scalar_select 0, %s6, %s4
  $region1: #{tpu_custom_call.1} parent=0
    #allocation2 [shape = 'u8[4096]{0}', space=vmem, size = 0x1000, scoped, tag = 'output window, operand 0']
    #allocation3 [shape = 's32[2]{0}', space=sflag, size = 0x8, scoped, tag = 'scoped memory for tpu_custom_call.1']
    %8 = vsyncpa [#allocation3], 0
    %s9 = scalar_lea.sflag [#allocation3], 1
    %10 = vsyncpa %s9, 0
    loop: start=0, step=1, limit=4
    $region2: #{tpu_custom_call.1} parent=1 // loop_pre_header
      _
    $region3: #{tpu_custom_call.1} parent=1 // loop_header
      %s12 = sphi 0, %s16
      %p13 = scmp.ge.s32.totalorder %s12, 4
      %s19 = sphi 0, %s31
      %s20 = sphi 0, %s27
      %s21 = sphi 0, %s19
      %s22 = sphi 0, %s20
      %s23 = sphi 0, %s21
      %s24 = sphi 0, %s22
      %s36 = sphi 0, %s38
      %s39 = sphi 0, %s36
      %s40 = sphi 0, %s39
      %s56 = sphi 0, %s40
      %s60 = sphi 0, %s60
      %s62 = sphi 0, %s60
      %s63 = sphi 0, %s62
      %s77 = sphi 0, %s63
      %s85 = sphi 0, %s87
      %s88 = sphi 0, %s85
      %s89 = sphi 0, %s88
      %s105 = sphi 0, %s89
      %s113 = sphi 0, %s115
      %s116 = sphi 0, %s113
      %s117 = sphi 0, %s116
      %s133 = sphi 0, %s117
    $region4: #{tpu_custom_call.1} parent=1 // loop_header_branch
      %15 = sbr.rel (%p13) target = $region8
    $region5: #{tpu_custom_call.1} parent=1 // loop_body
      %s17 = ssub.s32 %s12, 1
      %s18 = ssub.s32 %s12, 2
      %s25 = sadd.s32 1, %s20
      %p26 = scmp.ge.s32.totalorder %s25, 1
      %s27 = scalar_select %p26, 0, %s25
      %s28 = sadd.s32 1, %s19
      %s29 = scalar_select %p26, %s28, %s19
      %p30 = scmp.ge.s32.totalorder %s29, 2
      %s31 = scalar_select %p30, 0, %s29
      %s32 = ssub.s32 %s19, %s31
      %s33 = ssub.s32 %s20, %s27
      %s34 = sor.u32 %s32, %s33
      %p35 = scmp.eq.s32.totalorder %s34, 0
      %s37 = sadd.s32 %s36, 1
      %s38 = scalar_select %p35, %s36, %s37
      %p41 = pneg %p35
      %p42 = scmp.eq.s32.totalorder %s12, 1
      %p43 = por %p41, %p42
      %p44 = scmp.ne.s32.totalorder %s36, %s39
      %p45 = scmp.eq.s32.totalorder %s12, 0
      %p46 = por %p44, %p45
      %p47 = scmp.ne.s32.totalorder %s36, %s39
      %p48 = scmp.eq.s32.totalorder %s17, 1
      %p49 = por %p47, %p48
      %p50 = scmp.ne.s32.totalorder %s39, %s40
      %p51 = scmp.eq.s32.totalorder %s17, 0
      %p52 = por %p50, %p51
      %p53 = scmp.ne.s32.totalorder %s39, %s40
      %p54 = scmp.eq.s32.totalorder %s18, 1
      %p55 = por %p53, %p54
      %p57 = scmp.ne.s32.totalorder %s40, %s56
      %p58 = scmp.eq.s32.totalorder %s18, 0
      %p59 = por %p57, %p58
      %s61 = sadd.s32 %s60, 1
      %p64 = scmp.eq.s32.totalorder %s12, 1
      %p65 = scmp.ne.s32.totalorder %s60, %s62
      %p66 = scmp.eq.s32.totalorder %s12, 0
      %p67 = por %p65, %p66
      %p68 = scmp.ne.s32.totalorder %s60, %s62
      %p69 = scmp.eq.s32.totalorder %s17, 1
      %p70 = por %p68, %p69
      %p71 = scmp.ne.s32.totalorder %s62, %s63
      %p72 = scmp.eq.s32.totalorder %s17, 0
      %p73 = por %p71, %p72
      %p74 = scmp.ne.s32.totalorder %s62, %s63
      %p75 = scmp.eq.s32.totalorder %s18, 1
      %p76 = por %p74, %p75
      %p78 = scmp.ne.s32.totalorder %s63, %s77
      %p79 = scmp.eq.s32.totalorder %s18, 0
      %p80 = por %p78, %p79
      %s81 = ssub.s32 %s19, %s31
      %s82 = ssub.s32 %s20, %s27
      %s83 = sor.u32 %s81, %s82
      %p84 = scmp.eq.s32.totalorder %s83, 0
      %s86 = sadd.s32 %s85, 1
      %s87 = scalar_select %p84, %s85, %s86
      %p90 = pneg %p84
      %p91 = scmp.eq.s32.totalorder %s12, 1
      %p92 = por %p90, %p91
      %p93 = scmp.ne.s32.totalorder %s85, %s88
      %p94 = scmp.eq.s32.totalorder %s12, 0
      %p95 = por %p93, %p94
      %p96 = scmp.ne.s32.totalorder %s85, %s88
      %p97 = scmp.eq.s32.totalorder %s17, 1
      %p98 = por %p96, %p97
      %p99 = scmp.ne.s32.totalorder %s88, %s89
      %p100 = scmp.eq.s32.totalorder %s17, 0
      %p101 = por %p99, %p100
      %p102 = scmp.ne.s32.totalorder %s88, %s89
      %p103 = scmp.eq.s32.totalorder %s18, 1
      %p104 = por %p102, %p103
      %p106 = scmp.ne.s32.totalorder %s89, %s105
      %p107 = scmp.eq.s32.totalorder %s18, 0
      %p108 = por %p106, %p107
      %s109 = ssub.s32 %s19, %s31
      %s110 = ssub.s32 %s20, %s27
      %s111 = sor.u32 %s109, %s110
      %p112 = scmp.eq.s32.totalorder %s111, 0
      %s114 = sadd.s32 %s113, 1
      %s115 = scalar_select %p112, %s113, %s114
      %p118 = pneg %p112
      %p119 = scmp.eq.s32.totalorder %s12, 1
      %p120 = por %p118, %p119
      %p121 = scmp.ne.s32.totalorder %s113, %s116
      %p122 = scmp.eq.s32.totalorder %s12, 0
      %p123 = por %p121, %p122
      %p124 = scmp.ne.s32.totalorder %s113, %s116
      %p125 = scmp.eq.s32.totalorder %s17, 1
      %p126 = por %p124, %p125
      %p127 = scmp.ne.s32.totalorder %s116, %s117
      %p128 = scmp.eq.s32.totalorder %s17, 0
      %p129 = por %p127, %p128
      %p130 = scmp.ne.s32.totalorder %s116, %s117
      %p131 = scmp.eq.s32.totalorder %s18, 1
      %p132 = por %p130, %p131
      %p134 = scmp.ne.s32.totalorder %s117, %s133
      %p135 = scmp.eq.s32.totalorder %s18, 0
      %p136 = por %p134, %p135
      %p137 = scmp.le.s32.totalorder 1, %s12
      %p138 = scmp.lt.s32.totalorder %s12, 3
      %p139 = pnand %p137, %p138
      %p140 = pneg %p139
      // Predicated region
      $region9: #{tpu_custom_call.1} parent=5 // pred_check
        _
      $region10: #{tpu_custom_call.1} parent=5 // pred_check_branch
        %142 = sbr.rel (%p139) target = $region12
      $region11: #{tpu_custom_call.1} parent=5 // pred_region
        %s143 = ssub.s32 %s12, 1
        // Predicated region
        $region13: #{tpu_custom_call.1} parent=11 // pred_check
          %p144 = pneg %p73
        $region14: #{tpu_custom_call.1} parent=11 // pred_check_branch
          %146 = sbr.rel (%p144) target = $region16
        $region15: #{tpu_custom_call.1} parent=11 // pred_region
          _
        $region16: #{tpu_custom_call.1} parent=11 // pred_fallthru
          _
      $region12: #{tpu_custom_call.1} parent=5 // pred_fallthru
        _
      %p147 = scmp.lt.s32.totalorder %s12, 2
      // Predicated region
      $region17: #{tpu_custom_call.1} parent=5 // pred_check
        %p148 = pneg %p147
      $region18: #{tpu_custom_call.1} parent=5 // pred_check_branch
        %150 = sbr.rel (%p148) target = $region20
      $region19: #{tpu_custom_call.1} parent=5 // pred_region
        // Predicated region
        $region21: #{tpu_custom_call.1} parent=19 // pred_check
          %p151 = pneg %p46
        $region22: #{tpu_custom_call.1} parent=19 // pred_check_branch
          %153 = sbr.rel (%p151) target = $region24
        $region23: #{tpu_custom_call.1} parent=19 // pred_region
          %p154 = scmp.lt.s32.totalorder %s19, 1
          %s155 = scalar_select %p154, %s19, 1
          %p156 = scmp.lt.s32.totalorder %s20, 0
          %s157 = scalar_select %p156, %s20, 0
          %s158 = sadd.s32 %s157, %s155
          %s159 = smul.addr %s158, 4
          %s160 = scalar_lea.vmem %s0, %s159
        $region24: #{tpu_custom_call.1} parent=19 // pred_fallthru
          _
        // Predicated region
        $region25: #{tpu_custom_call.1} parent=19 // pred_check
          %p161 = pneg %p95
        $region26: #{tpu_custom_call.1} parent=19 // pred_check_branch
          %163 = sbr.rel (%p161) target = $region28
        $region27: #{tpu_custom_call.1} parent=19 // pred_region
          %p164 = scmp.lt.s32.totalorder %s19, 1
          %s165 = scalar_select %p164, %s19, 1
          %p166 = scmp.lt.s32.totalorder %s20, 0
          %s167 = scalar_select %p166, %s20, 0
          %s168 = sadd.s32 %s167, %s165
          %s169 = smul.addr %s168, 4
          %s170 = scalar_lea.vmem %s2, %s169
        $region28: #{tpu_custom_call.1} parent=19 // pred_fallthru
          _
      $region20: #{tpu_custom_call.1} parent=5 // pred_fallthru
        _
      %p171 = scmp.le.s32.totalorder 1, %s12
      %p172 = scmp.lt.s32.totalorder %s12, 3
      %p173 = pnand %p171, %p172
      %p174 = pneg %p173
      // Predicated region
      $region29: #{tpu_custom_call.1} parent=5 // pred_check
        _
      $region30: #{tpu_custom_call.1} parent=5 // pred_check_branch
        %176 = sbr.rel (%p173) target = $region32
      $region31: #{tpu_custom_call.1} parent=5 // pred_region
        %s177 = ssub.s32 %s12, 1
        %p178 = scmp.lt.s32.totalorder %s21, 1
        %s179 = scalar_select %p178, %s21, 1
        %p180 = scmp.lt.s32.totalorder %s22, 0
        %s181 = scalar_select %p180, %s22, 0
        %s182 = sadd.s32 %s181, %s179
        %s183 = smul.addr %s182, 4
        %s184 = scalar_lea.vmem %s0, %s183
        %p185 = pneg %p52
        %p186 = pneg %p49
        %p187 = pneg %p73
        %p188 = pneg %p70
        %p189 = scmp.lt.s32.totalorder %s21, 1
        %s190 = scalar_select %p189, %s21, 1
        %p191 = scmp.lt.s32.totalorder %s22, 0
        %s192 = scalar_select %p191, %s22, 0
        %s193 = sadd.s32 %s192, %s190
        %s194 = smul.addr %s193, 4
        %s195 = scalar_lea.vmem %s2, %s194
        %p196 = pneg %p101
        %p197 = pneg %p98
        %p198 = pneg %p129
        %p199 = pneg %p126
        %s200 = sand.u32 %s116, 1
        %s201 = scalar_lea.sflag [#allocation3], %s200
        %s202 = sand.u32 %s116, 1
        %s203 = smul.addr %s202, 4
        %s204 = scalar_lea.vmem [#allocation2], %s203
        %p205 = scmp.lt.s32.totalorder %s21, 1
        %s206 = scalar_select %p205, %s21, 1
        %p207 = scmp.lt.s32.totalorder %s22, 0
        %s208 = scalar_select %p207, %s22, 0
        %s209 = sadd.s32 %s208, %s206
        %s210 = smul.addr %s209, 4
        %s211 = scalar_lea.vmem %s0, %s210
        %p212 = scmp.lt.s32.totalorder %s21, 1
        %s213 = scalar_select %p212, %s21, 1
        %p214 = scmp.lt.s32.totalorder %s22, 0
        %s215 = scalar_select %p214, %s22, 0
        %s216 = sadd.s32 %s215, %s213
        %s217 = smul.addr %s216, 4
        %s218 = scalar_lea.vmem %s2, %s217
        %v219 = vld [vmem:[%s218] sm:$0xf]
        %v220 = vld [vmem:[%s211] sm:$0xf]
        %v221 = vld [vmem:[%s1] sm:$0x1]
        %222 = vset.pattern.permute.xlu0 0
        %223 = vperm.xlu0 %222, %v220
        %v224 = vpop.permute.xlu0 %223
        %v225 = vlaneseq
        %v226 = vshrl.u32 %v225, 7
        %v227 = vsub.s32 0, %v226
        %v228 = vrot.slane %v221, %v227
        %v229 = vand.u32 %v224, %v228
        %vm230 = vcmp.ne.s32.totalorder %v229, 0
        %v231 = vsel %vm230, -100000.0, %v219
        %232 = vst [vmem:[%s204] sm:$0xf] %v231
        %s233 = sand.u32 %s116, 1
        %s234 = scalar_lea.sflag [#allocation3], %s233
        %s235 = sand.u32 %s116, 1
        %s236 = smul.addr %s235, 4
        %s237 = scalar_lea.vmem [#allocation2], %s236
        // Predicated region
        $region33: #{tpu_custom_call.1} parent=31 // pred_check
          %p238 = pneg %p126
        $region34: #{tpu_custom_call.1} parent=31 // pred_check_branch
          %240 = sbr.rel (%p238) target = $region36
        $region35: #{tpu_custom_call.1} parent=31 // pred_region
          %s242 = ssub.s32 64, 64
          %243 = vsyncadd %s234, %s242
          %s244 = sadd.s32 %s22, %s21
          %s245 = smul.addr %s244, 64
          %s246 = scalar_lea.hbm %s3, %s245
          %s248 = sshll.u32 %s237, 4
          %s249 = int_to_ptr.vmem [resolvable:$true] %s248
          %251 = dma.vmem_to_hbm [thread:$0]  %s249, 64, %s246, %s234
        $region36: #{tpu_custom_call.1} parent=31 // pred_fallthru
          _
      $region32: #{tpu_custom_call.1} parent=5 // pred_fallthru
        _
      %p252 = scmp.le.s32.totalorder 2, %s12
      // Predicated region
      $region37: #{tpu_custom_call.1} parent=5 // pred_check
        %p253 = pneg %p252
      $region38: #{tpu_custom_call.1} parent=5 // pred_check_branch
        %255 = sbr.rel (%p253) target = $region40
      $region39: #{tpu_custom_call.1} parent=5 // pred_region
        %s256 = ssub.s32 %s12, 2
        // Predicated region
        $region41: #{tpu_custom_call.1} parent=39 // pred_check
          %p257 = pneg %p132
        $region42: #{tpu_custom_call.1} parent=39 // pred_check_branch
          %259 = sbr.rel (%p257) target = $region44
        $region43: #{tpu_custom_call.1} parent=39 // pred_region
          %s260 = sand.u32 %s117, 1
          %s261 = scalar_lea.sflag [#allocation3], %s260
          %s262 = sand.u32 %s117, 1
          %s263 = smul.addr %s262, 4
          %s264 = scalar_lea.vmem [#allocation2], %s263
          %265 = dma.done %s261, 64
        $region44: #{tpu_custom_call.1} parent=39 // pred_fallthru
          _
      $region40: #{tpu_custom_call.1} parent=5 // pred_fallthru
        _
    $region6: #{tpu_custom_call.1} parent=1 // loop_footer
      %s16 = sadd.s32 1, %s12
    $region7: #{tpu_custom_call.1} parent=1 // loop_footer_branch
      %11 = sbr.rel target = $region3
    $region8: #{tpu_custom_call.1} parent=1 // loop_exit
      _
    %266 = vsyncpa [#allocation3], 1
    %s267 = scalar_lea.sflag [#allocation3], 1
    %268 = vsyncpa %s267, 1

</llo_original>
